<compile_context>
chip_gen: v7x
topology: tpu7x:2x2x1
jax: 0.10.0
libtpu: 0.0.40
codegen_flags: <defaults>
</compile_context>

<pallas_src>
import functools

import jax
import jax.numpy as jnp
from jax import lax
from jax.experimental import pallas as pl
from jax.experimental.pallas import tpu as pltpu

NEG_INF = -1e30  # large finite negative; keeps flash softmax NaN-free


# ------------------------------- helpers ----------------------------------- #

def _pad_dim(a, axis, multiple, value=0):
    size = a.shape[axis]
    pad = (-size) % multiple
    if pad == 0:
        return a
    widths = [(0, 0)] * a.ndim
    widths[axis] = (0, pad)
    return jnp.pad(a, widths, constant_values=value)


# --------------------------- tiled linear kernels --------------------------- #

def _mm_kernel(x_ref, w_ref, o_ref, acc_ref):
    @pl.when(pl.program_id(2) == 0)
    def _():
        acc_ref[...] = jnp.zeros_like(acc_ref)

    acc_ref[...] += jnp.dot(x_ref[...].astype(jnp.bfloat16),
                            w_ref[...].astype(jnp.bfloat16),
                            preferred_element_type=jnp.float32)

    @pl.when(pl.program_id(2) == pl.num_programs(2) - 1)
    def _():
        o_ref[...] = acc_ref[...].astype(o_ref.dtype)


def _mm_bias_kernel(x_ref, w_ref, b_ref, o_ref, acc_ref):
    @pl.when(pl.program_id(2) == 0)
    def _():
        acc_ref[...] = jnp.zeros_like(acc_ref)

    acc_ref[...] += jnp.dot(x_ref[...].astype(jnp.bfloat16),
                            w_ref[...].astype(jnp.bfloat16),
                            preferred_element_type=jnp.float32)

    @pl.when(pl.program_id(2) == pl.num_programs(2) - 1)
    def _():
        o_ref[...] = (acc_ref[...] + b_ref[...].astype(jnp.float32)).astype(o_ref.dtype)


def _mm_dual_kernel(x_ref, wa_ref, wb_ref, oa_ref, ob_ref, acca_ref, accb_ref):
    # Two matmuls sharing one activation read (fused K/V projection).
    @pl.when(pl.program_id(2) == 0)
    def _():
        acca_ref[...] = jnp.zeros_like(acca_ref)
        accb_ref[...] = jnp.zeros_like(accb_ref)

    x = x_ref[...].astype(jnp.bfloat16)
    acca_ref[...] += jnp.dot(x, wa_ref[...].astype(jnp.bfloat16),
                             preferred_element_type=jnp.float32)
    accb_ref[...] += jnp.dot(x, wb_ref[...].astype(jnp.bfloat16),
                             preferred_element_type=jnp.float32)

    @pl.when(pl.program_id(2) == pl.num_programs(2) - 1)
    def _():
        oa_ref[...] = acca_ref[...].astype(oa_ref.dtype)
        ob_ref[...] = accb_ref[...].astype(ob_ref.dtype)


def linear_pallas(x, w, b=None, *, out_dtype=None, tm=512, tn=512, tk=512):
    """x: (M, K); w: (K, N) [ideally bf16]; b: (N,) or None -> (M, N)."""
    M, K = x.shape
    N = w.shape[1]
    out_dtype = x.dtype if out_dtype is None else out_dtype
    tm, tn, tk = min(tm, M), min(tn, N), min(tk, K)

    xp = _pad_dim(_pad_dim(x, 0, tm), 1, tk)      # no-op copies when divisible
    wp = _pad_dim(_pad_dim(w, 0, tk), 1, tn)
    Mp, Kp = xp.shape
    Np = wp.shape[1]
    grid = (Mp // tm, Np // tn, Kp // tk)

    x_spec = pl.BlockSpec((tm, tk), lambda i, j, kk: (i, kk))
    w_spec = pl.BlockSpec((tk, tn), lambda i, j, kk: (kk, j))
    o_spec = pl.BlockSpec((tm, tn), lambda i, j, kk: (i, j))

    cost = pl.CostEstimate(
        flops=2 * Mp * Np * Kp,
        transcendentals=0,
        bytes_accessed=(Mp * Kp * x.dtype.itemsize + Kp * Np * w.dtype.itemsize
                        + Mp * Np * jnp.dtype(out_dtype).itemsize))
    params = pltpu.CompilerParams(
        dimension_semantics=("parallel", "parallel", "arbitrary"))

    if b is None:
        out = pl.pallas_call(
            _mm_kernel,
            out_shape=jax.ShapeDtypeStruct((Mp, Np), out_dtype),
            grid=grid,
            in_specs=[x_spec, w_spec],
            out_specs=o_spec,
            scratch_shapes=[pltpu.VMEM((tm, tn), jnp.float32)],
            compiler_params=params,
            cost_estimate=cost,
        )(xp, wp)
    else:
        bp = _pad_dim(b.reshape(1, N).astype(jnp.float32), 1, tn)
        b_spec = pl.BlockSpec((1, tn), lambda i, j, kk: (0, j))
        out = pl.pallas_call(
            _mm_bias_kernel,
            out_shape=jax.ShapeDtypeStruct((Mp, Np), out_dtype),
            grid=grid,
            in_specs=[x_spec, w_spec, b_spec],
            out_specs=o_spec,
            scratch_shapes=[pltpu.VMEM((tm, tn), jnp.float32)],
            compiler_params=params,
            cost_estimate=cost,
        )(xp, wp, bp)

    if Mp > M or Np > N:
        out = out[:M, :N]
    return out


def linear_dual_pallas(x, wa, wb, *, out_dtype=None, tm=512, tn=512, tk=512):
    """Fused x@wa and x@wb (shared activation read). wa, wb: (K, N)."""
    M, K = x.shape
    N = wa.shape[1]
    out_dtype = x.dtype if out_dtype is None else out_dtype
    tm, tn, tk = min(tm, M), min(tn, N), min(tk, K)

    xp = _pad_dim(_pad_dim(x, 0, tm), 1, tk)
    wap = _pad_dim(_pad_dim(wa, 0, tk), 1, tn)
    wbp = _pad_dim(_pad_dim(wb, 0, tk), 1, tn)
    Mp, Kp = xp.shape
    Np = wap.shape[1]
    grid = (Mp // tm, Np // tn, Kp // tk)

    x_spec = pl.BlockSpec((tm, tk), lambda i, j, kk: (i, kk))
    wa_spec = pl.BlockSpec((tk, tn), lambda i, j, kk: (kk, j))
    wb_spec = pl.BlockSpec((tk, tn), lambda i, j, kk: (kk, j))
    oa_spec = pl.BlockSpec((tm, tn), lambda i, j, kk: (i, j))
    ob_spec = pl.BlockSpec((tm, tn), lambda i, j, kk: (i, j))

    cost = pl.CostEstimate(
        flops=4 * Mp * Np * Kp,
        transcendentals=0,
        bytes_accessed=(Mp * Kp * x.dtype.itemsize + 2 * Kp * Np * wa.dtype.itemsize
                        + 2 * Mp * Np * jnp.dtype(out_dtype).itemsize))

    oa, ob = pl.pallas_call(
        _mm_dual_kernel,
        out_shape=(jax.ShapeDtypeStruct((Mp, Np), out_dtype),
                   jax.ShapeDtypeStruct((Mp, Np), out_dtype)),
        grid=grid,
        in_specs=[x_spec, wa_spec, wb_spec],
        out_specs=(oa_spec, ob_spec),
        scratch_shapes=[pltpu.VMEM((tm, tn), jnp.float32),
                        pltpu.VMEM((tm, tn), jnp.float32)],
        compiler_params=pltpu.CompilerParams(
            dimension_semantics=("parallel", "parallel", "arbitrary")),
        cost_estimate=cost,
    )(xp, wap, wbp)

    if Mp > M or Np > N:
        oa = oa[:M, :N]
        ob = ob[:M, :N]
    return oa, ob


# --------------------------- flash attention kernel ------------------------- #

def _flash_attn_kernel(has_mask, kv_valid_len, *refs):
    if has_mask:
        q_ref, k_ref, v_ref, mask_ref, o_ref, m_sc, l_sc, acc_sc = refs
    else:
        q_ref, k_ref, v_ref, o_ref, m_sc, l_sc, acc_sc = refs

    ki = pl.program_id(2)

    @pl.when(ki == 0)
    def _():
        m_sc[...] = jnp.full_like(m_sc, NEG_INF)
        l_sc[...] = jnp.zeros_like(l_sc)
        acc_sc[...] = jnp.zeros_like(acc_sc)

    q = q_ref[0]                     # (H, tq, D) bf16, already head-split
    k = k_ref[0]                     # (H, tk, D) bf16
    v = v_ref[0]                     # (H, tk, D) bf16
    H, tq, D = q.shape
    tk = k.shape[1]

    # QK^T: bf16 operands into the MXU, f32 accumulation. 1/sqrt(D) is already
    # folded into Wq, so no per-step scaling here.
    s = jnp.einsum("hqd,hkd->hqk", q, k, preferred_element_type=jnp.float32)

    if has_mask:
        m = mask_ref[0]
        if jnp.issubdtype(mask_ref.dtype, jnp.floating):
            s = s + m[None, :, :].astype(jnp.float32)        # additive float mask
        else:
            s = jnp.where((m != 0)[None, :, :], s, NEG_INF)  # boolean (int8) mask
    elif kv_valid_len is not None:
        # Maskless variant but KV padded to a tile multiple: mask out-of-range keys.
        idx = ki * tk + lax.broadcasted_iota(jnp.int32, (tq, tk), 1)
        s = jnp.where((idx < kv_valid_len)[None, :, :], s, NEG_INF)

    # Online softmax (all statistics in f32).
    m_prev = m_sc[...]
    m_new = jnp.maximum(m_prev, jnp.max(s, axis=-1, keepdims=True))
    alpha = jnp.exp(m_prev - m_new)
    p = jnp.exp(s - m_new)
    l_sc[...] = alpha * l_sc[...] + jnp.sum(p, axis=-1, keepdims=True)
    # PV matmul: cast p to bf16 (v's dtype) so the MXU runs at bf16 rate.
    acc_sc[...] = alpha * acc_sc[...] + jnp.einsum(
        "hqk,hkd->hqd", p.astype(v.dtype), v, preferred_element_type=jnp.float32)
    m_sc[...] = m_new

    @pl.when(ki == pl.num_programs(2) - 1)
    def _():
        inv_l = pl.reciprocal(l_sc[...], approx=True)
        o = acc_sc[...] * inv_l                        # (H, tq, D) f32
        # Single head-merge per q block; output stays lane-dense (tq, H*D).
        o = o.transpose(1, 0, 2).reshape(tq, H * D)
        o_ref[0] = o.astype(o_ref.dtype)


def flash_attention_pallas(q, k, v, mask, *, block_q=256, block_kv=1024):
    """q: (B,H,L1,D), k/v: (B,H,L2,D) (bf16 preferred).
    mask: None, (B,L1,L2) int8 (bool) or f32 (additive).
    Returns (B, L1, H*D) in q.dtype."""
    B, H, L1, D = q.shape
    L2 = k.shape[2]
    HD = H * D

    tq = min(block_q, L1)
    tk = min(block_kv, L2)

    qp = _pad_dim(q, 2, tq)
    kp = _pad_dim(k, 2, tk)
    vp = _pad_dim(v, 2, tk)
    L1p, L2p = qp.shape[2], kp.shape[2]

    has_mask = mask is not None
    in_arrays = [qp, kp, vp]
    in_specs = [
        pl.BlockSpec((1, H, tq, D), lambda b, qi, ki: (b, 0, qi, 0)),
        pl.BlockSpec((1, H, tk, D), lambda b, qi, ki: (b, 0, ki, 0)),
        pl.BlockSpec((1, H, tk, D), lambda b, qi, ki: (b, 0, ki, 0)),
    ]
    mask_bytes = 0
    if has_mask:
        if jnp.issubdtype(mask.dtype, jnp.floating):
            maskp = _pad_dim(_pad_dim(mask, 1, tq, 0.0), 2, tk, NEG_INF)
        else:
            maskp = _pad_dim(_pad_dim(mask, 1, tq), 2, tk)   # pads with 0 (=masked)
        in_arrays.append(maskp)
        in_specs.append(pl.BlockSpec((1, tq, tk), lambda b, qi, ki: (b, qi, ki)))
        mask_bytes = maskp.size * maskp.dtype.itemsize

    kv_valid_len = L2 if (not has_mask and L2p > L2) else None
    kernel = functools.partial(_flash_attn_kernel, has_mask, kv_valid_len)

    cost = pl.CostEstimate(
        flops=4 * B * H * L1p * L2p * D,
        transcendentals=B * H * L1p * L2p,
        bytes_accessed=(qp.size + kp.size + vp.size + B * L1p * HD) * q.dtype.itemsize
        + mask_bytes)

    out = pl.pallas_call(
        kernel,
        out_shape=jax.ShapeDtypeStruct((B, L1p, HD), q.dtype),
        grid=(B, L1p // tq, L2p // tk),
        in_specs=in_specs,
        out_specs=pl.BlockSpec((1, tq, HD), lambda b, qi, ki: (b, qi, 0)),
        scratch_shapes=[
            pltpu.VMEM((H, tq, 1), jnp.float32),   # running max
            pltpu.VMEM((H, tq, 1), jnp.float32),   # running denom
            pltpu.VMEM((H, tq, D), jnp.float32),   # output accumulator
        ],
        compiler_params=pltpu.CompilerParams(
            dimension_semantics=("parallel", "parallel", "arbitrary")),
        cost_estimate=cost,
    )(*in_arrays)

    if L1p > L1:
        out = out[:, :L1, :]
    return out


# ------------------------------ Module wrapper ------------------------------ #

class EpipolarCrossAttentionPallas:
    def __init__(self, query_dim, context_dim=None, out_dim=None, heads=8,
                 dim_head=64, dropout=0.0, num_register_tokens=0, key=None):
        inner_dim = dim_head * heads
        ctx_dim = context_dim if context_dim is not None else query_dim
        self.heads = heads
        self.dim_head = dim_head
        self.inner_dim = inner_dim
        self.ctx_dim = ctx_dim
        self.num_register_tokens = num_register_tokens
        out_features = out_dim if out_dim is not None else query_dim

        key = jax.random.PRNGKey(0) if key is None else key
        k1, k2, k3, k4, k5, k6 = jax.random.split(key, 6)
        s = 0.02
        # f32 masters (PyTorch weight.T layout) — used by the pure-jnp reference.
        self.Wq = (jax.random.normal(k1, (query_dim, inner_dim)) * s).astype(jnp.float32)
        self.Wk = (jax.random.normal(k2, (ctx_dim, inner_dim)) * s).astype(jnp.float32)
        self.Wv = (jax.random.normal(k3, (ctx_dim, inner_dim)) * s).astype(jnp.float32)
        self.Wout = (jax.random.normal(k4, (inner_dim, out_features)) * s).astype(jnp.float32)
        self.bout = (jax.random.normal(k5, (out_features,)) * s).astype(jnp.float32)
        if num_register_tokens > 0:
            self.register_tokens = jax.random.normal(
                k6, (1, num_register_tokens, ctx_dim)).astype(jnp.float32)

        # bf16 kernel copies; the 1/sqrt(dim_head) attention scale is folded
        # into Wq so it never appears in the flash kernel's inner loop.
        scale = float(dim_head) ** -0.5
        self.Wq_k = (self.Wq * scale).astype(jnp.bfloat16)
        self.Wk_k = self.Wk.astype(jnp.bfloat16)
        self.Wv_k = self.Wv.astype(jnp.bfloat16)
        self.Wout_k = self.Wout.astype(jnp.bfloat16)
        # TODO(synk): nn.Dropout is identity at inference; training-mode dropout not implemented.

    def __call__(self, x, context, attn_mask=None):
        B, L1, _ = x.shape
        R = self.num_register_tokens
        H, D = self.heads, self.dim_head

        # Q projection (tiled bf16 matmul, f32 accumulation, bf16 activation out).
        q2d = linear_pallas(x.reshape(B * L1, -1), self.Wq_k, out_dtype=jnp.bfloat16)

        # Prepend register tokens to the context.
        if R > 0:
            reg = jnp.broadcast_to(self.register_tokens, (B, R, self.ctx_dim))
            context = jnp.concatenate([reg, context], axis=1)
        L2 = context.shape[1]

        # Fused K/V projection: context read from HBM once.
        k2d, v2d = linear_dual_pallas(context.reshape(B * L2, -1),
                                      self.Wk_k, self.Wv_k, out_dtype=jnp.bfloat16)

        # One-time relayout to (B, H, L, D): the flash kernel then needs no
        # per-KV-step head split / transpose at all.
        q4 = q2d.reshape(B, L1, H, D).transpose(0, 2, 1, 3)
        k4 = k2d.reshape(B, L2, H, D).transpose(0, 2, 1, 3)
        v4 = v2d.reshape(B, L2, H, D).transpose(0, 2, 1, 3)

        # Mask: None -> maskless kernel variant (nothing materialized/streamed);
        # bool -> int8 (1 byte/elem, -1e30/0 addend built in-kernel);
        # float -> f32 additive (PyTorch non-bool path, register pad with -0.0).
        if attn_mask is None:
            mask = None
        elif attn_mask.dtype == jnp.bool_:
            mask = jnp.pad(attn_mask, ((0, 0), (0, 0), (R, 0)),
                           constant_values=True).astype(jnp.int8)
        else:
            mask = jnp.pad(attn_mask.astype(jnp.float32),
                           ((0, 0), (0, 0), (R, 0)), constant_values=0.0)

        out = flash_attention_pallas(q4, k4, v4, mask)    # (B, L1, H*D) bf16

        # Output projection with bias (tiled bf16 matmul, f32 bias add).
        out = linear_pallas(out.reshape(B * L1, -1), self.Wout_k, self.bout,
                            out_dtype=x.dtype)
        return out.reshape(B, L1, -1)


# ------------------------------ Reference (jnp) ----------------------------- #

def reference_forward(mod, x, context, attn_mask=None):
    B, L1, _ = x.shape
    q = x @ mod.Wq
    if mod.num_register_tokens > 0:
        reg = jnp.broadcast_to(mod.register_tokens,
                               (B, mod.num_register_tokens, mod.ctx_dim))
        context = jnp.concatenate([reg, context], axis=1)
    k = context @ mod.Wk
    v = context @ mod.Wv
    if attn_mask is not None:
        padded = jnp.pad(attn_mask, ((0, 0), (0, 0), (mod.num_register_tokens, 0)),
                         constant_values=True)
        addmask = jnp.where(padded, 0.0, -jnp.inf)[:, None, :, :]
    else:
        addmask = 0.0

    def split_heads(t):
        L = t.shape[1]
        return t.reshape(B, L, mod.heads, mod.dim_head).transpose(0, 2, 1, 3)

    qh, kh, vh = split_heads(q), split_heads(k), split_heads(v)
    s = jnp.einsum("bhqd,bhkd->bhqk", qh, kh) / (mod.dim_head ** 0.5) + addmask
    p = jax.nn.softmax(s, axis=-1)
    o = jnp.einsum("bhqk,bhkd->bhqd", p, vh)
    o = o.transpose(0, 2, 1, 3).reshape(B, L1, mod.inner_dim)
    return o @ mod.Wout + mod.bout


# ---------------------------------- main ------------------------------------ #

if __name__ == "__main__":
    B, L1, L2 = 2, 8, 8
    query_dim = 32
    context_dim = 32
    heads = 2
    dim_head = 16
    num_register_tokens = 2

    key = jax.random.PRNGKey(0)
    kx, kc, km, kparam = jax.random.split(key, 4)
    x = jax.random.normal(kx, (B, L1, query_dim), dtype=jnp.float32)
    context = jax.random.normal(kc, (B, L2, context_dim), dtype=jnp.float32)
    attn_mask = jax.random.bernoulli(km, 0.7, (B, L1, L2))  # bool epipolar mask

    mod = EpipolarCrossAttentionPallas(
        query_dim=query_dim, context_dim=context_dim, out_dim=None,
        heads=heads, dim_head=dim_head, dropout=0.0,
        num_register_tokens=num_register_tokens, key=kparam,
    )

    # Masked path (bool epipolar mask).
    out = mod(x, context, attn_mask)
    out = jax.block_until_ready(out)
    assert out.shape == (B, L1, query_dim), out.shape
    ref = reference_forward(mod, x, context, attn_mask)
    err = jnp.max(jnp.abs(out - ref))
    assert jnp.allclose(out, ref, atol=5e-3, rtol=5e-3), f"mismatch vs reference: {err}"

    # Maskless path (exercises the no-mask kernel variant).
    out_nm = mod(x, context, None)
    out_nm = jax.block_until_ready(out_nm)
    ref_nm = reference_forward(mod, x, context, None)
    err_nm = jnp.max(jnp.abs(out_nm - ref_nm))
    assert jnp.allclose(out_nm, ref_nm, atol=5e-3, rtol=5e-3), \
        f"mismatch vs maskless reference: {err_nm}"

    print("KERNEL_OK")
</pallas_src>

<mosaic_0001>
module attributes {stable_mosaic.version = 11 : i64} {
  func.func @_mm_kernel(%arg0: i32, %arg1: i32, %arg2: i32, %arg3: memref<16x32xf32, #tpu.memory_space<vmem>>, %arg4: memref<32x32xbf16, #tpu.memory_space<vmem>>, %arg5: memref<16x32xbf16, #tpu.memory_space<vmem>>, %arg6: memref<16x32xf32, #tpu.memory_space<vmem>>) attributes {dimension_semantics = [#tpu.dimension_semantics<parallel>, #tpu.dimension_semantics<parallel>, #tpu.dimension_semantics<arbitrary>], iteration_bounds = array<i64: 1, 1, 1>, scalar_prefetch = 0 : i64, scratch_operands = 1 : i64, tpu.core_type = #tpu.core_type<tc>, window_params = [{transform_indices = @transform_0, window_bounds = array<i64: 16, 32>}, {transform_indices = @transform_1, window_bounds = array<i64: 32, 32>}, {transform_indices = @transform_2, window_bounds = array<i64: 16, 32>}]} {
    %c0_i32 = arith.constant 0 : i32
    %0 = arith.cmpi eq, %arg2, %c0_i32 : i32
    %1 = arith.extui %0 : i1 to i32
    %c0_i32_0 = arith.constant 0 : i32
    %2 = arith.cmpi ne, %1, %c0_i32_0 : i32
    scf.if %2 {
      %cst_10 = arith.constant 0.000000e+00 : f32
      %13 = vector.broadcast %cst_10 : f32 to vector<16x32xf32>
      %c0_11 = arith.constant 0 : index
      %c0_12 = arith.constant 0 : index
      %14 = vector.load %arg6[%c0_11, %c0_12] : memref<16x32xf32, #tpu.memory_space<vmem>>, vector<16x32xf32>
      tpu.vector_store %arg6[%c0_11, %c0_12], %13 {strides = array<i32>} : memref<16x32xf32, #tpu.memory_space<vmem>>, vector<16x32xf32>,
    } else {
    }
    %c0 = arith.constant 0 : index
    %c0_1 = arith.constant 0 : index
    %3 = vector.load %arg6[%c0, %c0_1] : memref<16x32xf32, #tpu.memory_space<vmem>>, vector<16x32xf32>
    %c0_2 = arith.constant 0 : index
    %c0_3 = arith.constant 0 : index
    %4 = vector.load %arg3[%c0_2, %c0_3] : memref<16x32xf32, #tpu.memory_space<vmem>>, vector<16x32xf32>
    %5 = arith.truncf %4 : vector<16x32xf32> to vector<16x32xbf16>
    %c0_4 = arith.constant 0 : index
    %c0_5 = arith.constant 0 : index
    %6 = vector.load %arg4[%c0_4, %c0_5] : memref<32x32xbf16, #tpu.memory_space<vmem>>, vector<32x32xbf16>
    %cst = arith.constant dense<0.000000e+00> : vector<16x32xf32>
    %7 = tpu.matmul %5, %6, %cst {dimension_numbers = #tpu.dot_dimension_numbers<[1], [0], [0], [1], [0, 0, 1, 1], [], []>} : vector<16x32xbf16>, vector<32x32xbf16>, vector<16x32xf32> -> vector<16x32xf32>
    %8 = arith.addf %3, %7 : vector<16x32xf32>
    %c0_6 = arith.constant 0 : index
    %c0_7 = arith.constant 0 : index
    %9 = vector.load %arg6[%c0_6, %c0_7] : memref<16x32xf32, #tpu.memory_space<vmem>>, vector<16x32xf32>
    tpu.vector_store %arg6[%c0_6, %c0_7], %8 {strides = array<i32>} : memref<16x32xf32, #tpu.memory_space<vmem>>, vector<16x32xf32>,
    %c0_i32_8 = arith.constant 0 : i32
    %10 = arith.cmpi eq, %arg2, %c0_i32_8 : i32
    %11 = arith.extui %10 : i1 to i32
    %c0_i32_9 = arith.constant 0 : i32
    %12 = arith.cmpi ne, %11, %c0_i32_9 : i32
    scf.if %12 {
      %c0_10 = arith.constant 0 : index
      %c0_11 = arith.constant 0 : index
      %13 = vector.load %arg6[%c0_10, %c0_11] : memref<16x32xf32, #tpu.memory_space<vmem>>, vector<16x32xf32>
      %14 = arith.truncf %13 : vector<16x32xf32> to vector<16x32xbf16>
      %c0_12 = arith.constant 0 : index
      %c0_13 = arith.constant 0 : index
      %15 = vector.load %arg5[%c0_12, %c0_13] : memref<16x32xbf16, #tpu.memory_space<vmem>>, vector<16x32xbf16>
      tpu.vector_store %arg5[%c0_12, %c0_13], %14 {strides = array<i32>} : memref<16x32xbf16, #tpu.memory_space<vmem>>, vector<16x32xbf16>,
    } else {
    }
    return
  }
  func.func @transform_0(%arg0: i32, %arg1: i32, %arg2: i32) -> (i32, i32) {
    %c0_i32 = arith.constant 0 : i32
    return %arg0, %arg2 : i32, i32
  }
  func.func @transform_1(%arg0: i32, %arg1: i32, %arg2: i32) -> (i32, i32) {
    %c0_i32 = arith.constant 0 : i32
    return %arg2, %arg1 : i32, i32
  }
  func.func @transform_2(%arg0: i32, %arg1: i32, %arg2: i32) -> (i32, i32) {
    %c0_i32 = arith.constant 0 : i32
    return %arg0, %arg1 : i32, i32
  }
}

</mosaic_0001>

<llo_original>
// kernel: tpu_custom_call.1
$region0: #{tpu_custom_call.1}
  #allocation0 [shape = 'u32[]', space=smem, size = 0x4, offset = 0x4, fixed_abs, tag = 'smem constant byte address 0x4 - core index']
  #allocation1 [shape = 'u32[144,128]{1,0:T(1,128)}', space=vmem, size = 0x12000, scoped, tag = 'internal scratch']
  #allocation2 [shape = 'f32[16,32]{1,0:T(8,128)}', space=vmem, size = 0x2000, scoped, tag = 'scratch operand']
  %s0 = inlined_call_operand.hbm [shape: f32[16,32], index: 0, kind: input, shape index: {}]
  %s1 = inlined_call_operand.hbm [shape: bf16[32,32], index: 1, kind: input, shape index: {}]
  %s2 = inlined_call_operand.hbm [shape: bf16[16,32], index: 2, kind: output, shape index: {}]
  %s3 = sld [smem:[#allocation0]]
  $region34: #{tpu_custom_call.1} parent=0
    _
  %s5 = ssub.s32 1, %s3
  %s6 = scalar_select 0, %s5, %s3
  $region1: #{tpu_custom_call.1} parent=0
    #allocation3 [shape = 'u8[8192]{0}', space=vmem, size = 0x2000, scoped, tag = 'input window, operand 0, single buffered']
    #allocation4 [shape = 's32[1]{0}', space=sflag, size = 0x4, scoped, tag = 'scoped memory for tpu_custom_call.1']
    #allocation5 [shape = 's32[1]{0}', space=sflag, size = 0x4, scoped, tag = 'scoped memory for tpu_custom_call.1']
    #allocation6 [shape = 'u8[8192]{0}', space=vmem, size = 0x2000, scoped, tag = 'input window, operand 1, single buffered']
    #allocation7 [shape = 's32[1]{0}', space=sflag, size = 0x4, scoped, tag = 'scoped memory for tpu_custom_call.1']
    #allocation8 [shape = 'u8[4096]{0}', space=vmem, size = 0x1000, scoped, tag = 'output window, operand 0, single buffered']
    %7 = vsyncpa [#allocation4], 0
    %8 = vsyncpa [#allocation7], 0
    %9 = vsyncpa [#allocation5], 0
    // Predicated region
    $region2: #{tpu_custom_call.1} parent=1 // pred_check
      _
    $region3: #{tpu_custom_call.1} parent=1 // pred_check_branch
      %11 = sbr.rel (0) target = $region5
    $region4: #{tpu_custom_call.1} parent=1 // pred_region
      %s13 = ssub.s32 256, 256
      %14 = vsyncadd [#allocation4], %s13
      %s15 = sshll.u32 [#allocation3], 4
      %s16 = int_to_ptr.vmem [resolvable:$true] %s15
      %21 = dma.hbm_to_vmem [thread:$0]  %s0, 256, %s16, [#allocation4], 128, 128, 8
    $region5: #{tpu_custom_call.1} parent=1 // pred_fallthru
      _
    // Predicated region
    $region6: #{tpu_custom_call.1} parent=1 // pred_check
      _
    $region7: #{tpu_custom_call.1} parent=1 // pred_check_branch
      %23 = sbr.rel (0) target = $region9
    $region8: #{tpu_custom_call.1} parent=1 // pred_region
      %s25 = ssub.s32 256, 256
      %26 = vsyncadd [#allocation7], %s25
      %s27 = sshll.u32 [#allocation6], 4
      %s28 = int_to_ptr.vmem [resolvable:$true] %s27
      %33 = dma.hbm_to_vmem [thread:$0]  %s1, 256, %s28, [#allocation7], 64, 64, 4
    $region9: #{tpu_custom_call.1} parent=1 // pred_fallthru
      _
    // Predicated region
    $region10: #{tpu_custom_call.1} parent=1 // pred_check
      _
    $region11: #{tpu_custom_call.1} parent=1 // pred_check_branch
      %35 = sbr.rel (0) target = $region13
    $region12: #{tpu_custom_call.1} parent=1 // pred_region
      %36 = dma.done [#allocation4], 256
    $region13: #{tpu_custom_call.1} parent=1 // pred_fallthru
      _
    // Predicated region
    $region14: #{tpu_custom_call.1} parent=1 // pred_check
      _
    $region15: #{tpu_custom_call.1} parent=1 // pred_check_branch
      %38 = sbr.rel (0) target = $region17
    $region16: #{tpu_custom_call.1} parent=1 // pred_region
      %39 = dma.done [#allocation7], 256
    $region17: #{tpu_custom_call.1} parent=1 // pred_fallthru
      _
    %p41 = scmp.eq.s32.totalorder 0, 0
    // Predicated region
    $region18: #{tpu_custom_call.1} parent=1 // pred_check
      %p42 = pneg %p41
    $region19: #{tpu_custom_call.1} parent=1 // pred_check_branch
      %44 = sbr.rel (%p42) target = $region21
    $region20: #{tpu_custom_call.1} parent=1 // pred_region
      %vm45 = vcmask 261120
      %46 = vst.msk [vmem:[#allocation2] sm:$0xff] %vm45, 0.0
      %47 = vst.msk [vmem:[#allocation2 + $0x8] sm:$0xff] %vm45, 0.0
    $region21: #{tpu_custom_call.1} parent=1 // pred_fallthru
      _
    %v48 = vld [vmem:[#allocation2] sm:$0xff]
    %v49 = vld [vmem:[#allocation2 + $0x8] sm:$0xff]
    %v50 = vld [vmem:[#allocation3] sm:$0xff]
    %v51 = vld [vmem:[#allocation3 + $0x8] sm:$0xff]
    %v52 = vpack.c.bf16 %v51, %v50
    %v53 = vld [vmem:[#allocation6] sm:$0xf]
    %v54 = vld [vmem:[#allocation6 + $0x4] sm:$0xf]
    %v55 = vld [vmem:[#allocation6 + $0x8] sm:$0xf]
    %v56 = vld [vmem:[#allocation6 + $0xc] sm:$0xf]
    %v61 = vunpack.c.l.b16 %v53
    %v62 = vunpack.c.l.b16 %v54
    %v63 = vunpack.c.l.b16 %v55
    %v64 = vunpack.c.l.b16 %v56
    %v65 = vpack.c.b16 %v62, %v61
    %v66 = vpack.c.b16 %v64, %v63
    %vm69 = vcmask 261120
    %v71 = vsel %vm69, %v52, 0
    %73 = vmatprep.subr.bf16.mxu0 0
    %74 = vmatpush1.bf16.msra.mxu0 %v65
    %75 = vmatprep.subr.bf16.mxu0 0
    %76 = vmatpush1.bf16.msra.mxu0 %v66
    %77 = vmatprep.subr.bf16.mxu0 0
    %78 = vmatpush1.bf16.msra.mxu0 0
    %79 = vmatprep.subr.bf16.mxu0 0
    %80 = vmatpush1.bf16.msra.mxu0 0
    %81 = vmatprep.subr.bf16.mxu0 0
    %82 = vmatpush1.bf16.msra.mxu0 0
    %83 = vmatprep.subr.bf16.mxu0 0
    %84 = vmatpush1.bf16.msra.mxu0 0
    %85 = vmatprep.subr.bf16.mxu0 0
    %86 = vmatpush1.bf16.msra.mxu0 0
    %87 = vmatprep.subr.bf16.mxu0 0
    %88 = vmatpush1.bf16.msra.mxu0 0
    %89 = vmatprep.subr.bf16.mxu0 0
    %90 = vmatpush1.bf16.msra.mxu0 0
    %91 = vmatprep.subr.bf16.mxu0 0
    %92 = vmatpush1.bf16.msra.mxu0 0
    %93 = vmatprep.subr.bf16.mxu0 0
    %94 = vmatpush1.bf16.msra.mxu0 0
    %95 = vmatprep.subr.bf16.mxu0 0
    %96 = vmatpush1.bf16.msra.mxu0 0
    %97 = vmatprep.subr.bf16.mxu0 0
    %98 = vmatpush1.bf16.msra.mxu0 0
    %99 = vmatprep.subr.bf16.mxu0 0
    %100 = vmatpush1.bf16.msra.mxu0 0
    %101 = vmatprep.subr.bf16.mxu0 0
    %102 = vmatpush1.bf16.msra.mxu0 0
    %103 = vmatprep.subr.bf16.mxu0 0
    %104 = vmatpush1.bf16.msra.mxu0 0
    %105 = vmatprep.mubr.bf16.mxu0 0
    %106 = vmatmul.mubr.bf16.gmra.mrb[0].mxu0 %v71
    %v107 = vpop.f32.mrb[0].mxu0
    %v108 = vadd.f32 0.0, %v107
    %v109 = vpop.f32.mrb[0].mxu0
    %v110 = vpop.f32.mrb[0].mxu0
    %v111 = vadd.f32 0.0, %v110
    %v112 = vpop.f32.mrb[0].mxu0
    %113 = vdwg.mxu0
    %v114 = vadd.f32 %v48, %v108
    %v115 = vadd.f32 %v49, %v111
    %116 = vst.msk [vmem:[#allocation2] sm:$0xff] %vm69, %v114
    %117 = vst.msk [vmem:[#allocation2 + $0x8] sm:$0xff] %vm69, %v115
    // Predicated region
    $region22: #{tpu_custom_call.1} parent=1 // pred_check
      %p118 = pneg %p41
    $region23: #{tpu_custom_call.1} parent=1 // pred_check_branch
      %120 = sbr.rel (%p118) target = $region25
    $region24: #{tpu_custom_call.1} parent=1 // pred_region
      %v121 = vld [vmem:[#allocation2] sm:$0xff]
      %v122 = vld [vmem:[#allocation2 + $0x8] sm:$0xff]
      %v123 = vpack.c.bf16 %v122, %v121
      %v125 = vunpack.c.l.b16 %v123
      %v126 = vunpack.c.h.b16 %v123
      %v127 = vpack.c.b16 %v125, %v125
      %v128 = vpack.c.b16 %v126, %v126
      %vm131 = vcmask 257024
      %132 = vst.msk [vmem:[#allocation8] sm:$0xf] %vm131, %v127
      %133 = vst.msk [vmem:[#allocation8 + $0x4] sm:$0xf] %vm131, %v128
    $region25: #{tpu_custom_call.1} parent=1 // pred_fallthru
      _
    // Predicated region
    $region26: #{tpu_custom_call.1} parent=1 // pred_check
      _
    $region27: #{tpu_custom_call.1} parent=1 // pred_check_branch
      %135 = sbr.rel (0) target = $region29
    $region28: #{tpu_custom_call.1} parent=1 // pred_region
      %s137 = ssub.s32 128, 128
      %138 = vsyncadd [#allocation5], %s137
      %s139 = sshll.u32 [#allocation8], 4
      %s140 = int_to_ptr.vmem [resolvable:$true] %s139
      %145 = dma.vmem_to_hbm [thread:$0]  %s140, 128, %s2, [#allocation5], 64, 64, 4
    $region29: #{tpu_custom_call.1} parent=1 // pred_fallthru
      _
    // Predicated region
    $region30: #{tpu_custom_call.1} parent=1 // pred_check
      _
    $region31: #{tpu_custom_call.1} parent=1 // pred_check_branch
      %147 = sbr.rel (0) target = $region33
    $region32: #{tpu_custom_call.1} parent=1 // pred_region
      %148 = dma.done [#allocation5], 128
    $region33: #{tpu_custom_call.1} parent=1 // pred_fallthru
      _
    %149 = vsyncpa [#allocation4], 1
    %150 = vsyncpa [#allocation7], 1
    %151 = vsyncpa [#allocation5], 1

</llo_original>
